<compile_context>
chip_gen: v7x
topology: tpu7x:2x2x1
jax: 0.10.0
libtpu: 0.0.40
codegen_flags: <defaults>
</compile_context>

<pallas_src>
import jax
import jax.numpy as jnp
from jax import lax
from jax.experimental import pallas as pl
from jax.experimental.pallas import tpu as pltpu


_MIB = 1024 * 1024


def _round_up(a, b):
    return (a + b - 1) // b * b


def _round_down_mult(a, b):
    return (a // b) * b


def _largest_dividing_tile(n, quantum, upper, lower):
    """Largest d with d % quantum == 0, d | n and lower <= d <= upper, else None."""
    d = _round_down_mult(min(upper, n), quantum)
    while d >= lower:
        if d > 0 and n % d == 0:
            return d
        d -= quantum
    return None


def _vmem_capacity_bytes():
    try:
        info = pltpu.get_tpu_info()
        cap = getattr(info, "vmem_capacity_bytes", None)
        if cap:
            return int(cap)
    except Exception:
        pass
    return 64 * _MIB  # conservative fallback: v7x per-TensorCore VMEM


# ---------------------------------------------------------------------------
# Kernels
# ---------------------------------------------------------------------------
def _proj_kernel_fullk(x_ref, w_ref, b_ref, o_ref):
    # x_ref: (tm, K)   w_ref: (tn, K)   b_ref: (1, tn)   o_ref: (tm, tn)
    # Contract the minor dim of both operands (A @ B^T) -> MXU transpose_rhs.
    acc = lax.dot_general(
        x_ref[...], w_ref[...],
        dimension_numbers=(((1,), (1,)), ((), ())),
        preferred_element_type=jnp.float32,
    )
    o_ref[...] = (acc + b_ref[...].astype(jnp.float32)).astype(o_ref.dtype)


def _proj_kernel_ksplit(x_ref, w_ref, b_ref, o_ref, acc_ref):
    # x_ref: (tm, tk)  w_ref: (tn, tk)  b_ref: (1, tn)  o_ref/acc_ref: (tm, tn)
    k = pl.program_id(2)

    @pl.when(k == 0)
    def _():
        acc_ref[...] = jnp.zeros_like(acc_ref)

    acc_ref[...] += lax.dot_general(
        x_ref[...], w_ref[...],
        dimension_numbers=(((1,), (1,)), ((), ())),
        preferred_element_type=jnp.float32,
    )

    @pl.when(k == pl.num_programs(2) - 1)
    def _():
        o_ref[...] = (acc_ref[...] + b_ref[...].astype(jnp.float32)).astype(o_ref.dtype)


# ---------------------------------------------------------------------------
# Tile selection
# ---------------------------------------------------------------------------
def _pick_tiles(M, K, V, x_isz, w_isz, o_isz, b_isz, budget, sublane):
    """Return (tm, tn, tk); tk == K means full-K blocks (no reduction axis)."""
    tm = M if M <= 512 else 512
    tn = V if V <= 2048 else 2048
    tm_floor = tm if tm <= 256 else 256
    tn_floor = tn if tn <= 1024 else 1024

    def ws(tm_, tn_, tk_):
        # Double-buffered input/output blocks (+ f32 accumulator when K split).
        w = 2 * (tm_ * tk_ * x_isz + tn_ * tk_ * w_isz
                 + tm_ * tn_ * o_isz + tn_ * b_isz)
        if tk_ != K:
            w += tm_ * tn_ * 4
        return w

    # Stage 1: full-K blocks.  Shrink tm first (only adds ~0.35us/step of
    # overhead); shrink tn last (x is re-streamed V/tn times from HBM).
    while ws(tm, tn, K) > budget and tm > tm_floor:
        tm = max(tm_floor, _round_down_mult(tm // 2, sublane))
    while ws(tm, tn, K) > budget and tn > tn_floor:
        tn = max(tn_floor, _round_down_mult(tn // 2, 128))
    if ws(tm, tn, K) <= budget:
        return tm, tn, K

    # Stage 2: split K instead of shrinking tn further.  tk must be a
    # lane-dense multiple of 128 that divides K (no weight pad along K).
    if K % 128 == 0:
        n = 2
        while K // n >= 128:
            tk = K // n
            if K % n == 0 and tk % 128 == 0 and ws(tm, tn, tk) <= budget:
                return tm, tn, tk
            n += 1

    # Last resort: full-K with hard-floor tiles (extreme K / tiny VMEM).
    while ws(tm, tn, K) > budget and tn > 128:
        tn = max(128, _round_down_mult(tn // 2, 128))
    while ws(tm, tn, K) > budget and tm > sublane:
        tm = max(sublane, _round_down_mult(tm // 2, sublane))
    return tm, tn, K


# ---------------------------------------------------------------------------
# Wrapper
# ---------------------------------------------------------------------------
def projection_layer(x, weight, bias, *, compute_dtype=None, vmem_block_budget=None):
    """y = x @ weight.T + bias, matching nn.Linear semantics.

    x:      (..., d_model)
    weight: (vocab_size, d_model)   (PyTorch convention, never transposed in HBM)
    bias:   (vocab_size,)
    returns (..., vocab_size) in x.dtype
    """
    d_model = x.shape[-1]
    vocab = weight.shape[0]
    lead = x.shape[:-1]
    out_dtype = x.dtype

    x2 = x.reshape(-1, d_model)
    M = x2.shape[0]

    w = weight
    if compute_dtype is not None:
        # Optional bf16 matmul operands (f32 accumulation preserved below).
        # TODO(synk): store the weight in compute_dtype at init time so this
        # cast never materializes a per-call weight-sized HBM copy.
        x2 = x2.astype(compute_dtype)
        w = w.astype(compute_dtype)

    x_isz = jnp.dtype(x2.dtype).itemsize
    w_isz = jnp.dtype(w.dtype).itemsize
    b_isz = jnp.dtype(bias.dtype).itemsize
    o_isz = jnp.dtype(out_dtype).itemsize
    sublane = max(8, 32 // max(1, min(x_isz, o_isz)))  # 8 f32 / 16 bf16 / 32 int8

    # ---- chip-aware VMEM sizing --------------------------------------------
    vmem_cap = _vmem_capacity_bytes()
    vmem_limit = max(32 * _MIB, min(vmem_cap - 8 * _MIB, 112 * _MIB))
    if vmem_block_budget is None:
        vmem_block_budget = max(24 * _MIB, vmem_limit - 12 * _MIB)

    tm, tn, tk = _pick_tiles(M, d_model, vocab, x_isz, w_isz, o_isz, b_isz,
                             vmem_block_budget, sublane)
    ksplit = (tk != d_model)

    # ---- prefer dividing tile sizes so the weight never needs a pad copy ----
    if tn != vocab and vocab % tn != 0:
        d = _largest_dividing_tile(vocab, 128, tn, max(128, tn // 4))
        if d is not None:
            tn = d
    if tm != M and M % tm != 0:
        d = _largest_dividing_tile(M, sublane, tm, max(sublane, tm // 2))
        if d is not None:
            tm = d

    # ---- pad ragged edges only if no dividing tile exists -------------------
    M_pad = M if tm == M else _round_up(M, tm)
    V_pad = vocab if tn == vocab else _round_up(vocab, tn)

    if M_pad != M:
        x2 = jnp.pad(x2, ((0, M_pad - M), (0, 0)))          # cheap: activations
    b2 = bias.reshape(1, vocab)
    if V_pad != vocab:
        # TODO(synk): replace with a masked store on the last vocab stripe so a
        # ragged vocab never costs a weight-sized HBM pad copy.
        w = jnp.pad(w, ((0, V_pad - vocab), (0, 0)))
        b2 = jnp.pad(b2, ((0, 0), (0, V_pad - vocab)))

    n_v = V_pad // tn
    n_m = M_pad // tm

    # Weight-stationary ordering: vocab stripe is the OUTER grid axis, so the
    # (big) weight block index is unchanged across the inner M sweep and
    # Pallas skips its DMA -> weight streamed from HBM once per stripe.
    if not ksplit:
        grid = (n_v, n_m)
        in_specs = [
            pl.BlockSpec((tm, d_model), lambda j, i: (i, 0)),   # x tile
            pl.BlockSpec((tn, d_model), lambda j, i: (j, 0)),   # weight stripe
            pl.BlockSpec((1, tn), lambda j, i: (0, j)),         # bias stripe
        ]
        out_spec = pl.BlockSpec((tm, tn), lambda j, i: (i, j))
        scratch = []
        kernel = _proj_kernel_fullk
        dim_sem = ("parallel", "parallel")
        w_bytes = V_pad * d_model * w_isz
    else:
        n_k = d_model // tk
        grid = (n_v, n_m, n_k)
        in_specs = [
            pl.BlockSpec((tm, tk), lambda j, i, k: (i, k)),
            pl.BlockSpec((tn, tk), lambda j, i, k: (j, k)),
            pl.BlockSpec((1, tn), lambda j, i, k: (0, j)),
        ]
        out_spec = pl.BlockSpec((tm, tn), lambda j, i, k: (i, j))
        scratch = [pltpu.VMEM((tm, tn), jnp.float32)]
        kernel = _proj_kernel_ksplit
        dim_sem = ("parallel", "parallel", "arbitrary")
        w_bytes = V_pad * d_model * w_isz * n_m                 # re-streamed per M tile

    cost = pl.CostEstimate(
        flops=2 * M_pad * d_model * V_pad,
        transcendentals=0,
        bytes_accessed=(M_pad * d_model * x_isz * n_v           # x re-read per stripe
                        + w_bytes
                        + M_pad * V_pad * o_isz
                        + V_pad * b_isz),
    )

    out = pl.pallas_call(
        kernel,
        out_shape=jax.ShapeDtypeStruct((M_pad, V_pad), out_dtype),
        grid_spec=pltpu.PrefetchScalarGridSpec(
            num_scalar_prefetch=0,
            grid=grid,
            in_specs=in_specs,
            out_specs=out_spec,
            scratch_shapes=scratch,
        ),
        compiler_params=pltpu.CompilerParams(
            dimension_semantics=dim_sem,
            vmem_limit_bytes=int(vmem_limit),
        ),
        cost_estimate=cost,
    )(x2, w, b2)

    if M_pad != M or V_pad != vocab:
        out = out[:M, :vocab]
    return out.reshape(*lead, vocab)


if __name__ == "__main__":
    # Small shapes consistent with the module: (batch, seq, d_model) -> vocab.
    batch, seq, d_model, vocab_size = 2, 8, 32, 512

    key = jax.random.PRNGKey(0)
    kx, kw, kb = jax.random.split(key, 3)

    # Deterministic nn.Linear-style init: U(-1/sqrt(d_model), 1/sqrt(d_model)).
    bound = 1.0 / (d_model ** 0.5)
    weight = jax.random.uniform(kw, (vocab_size, d_model), jnp.float32,
                                minval=-bound, maxval=bound)
    bias = jax.random.uniform(kb, (vocab_size,), jnp.float32,
                              minval=-bound, maxval=bound)
    x = jax.random.normal(kx, (batch, seq, d_model), jnp.float32)

    y = projection_layer(x, weight, bias)
    jax.block_until_ready(y)

    # Correctness check against plain JAX reference.
    y_ref = x @ weight.T + bias
    assert y.shape == (batch, seq, vocab_size)
    assert jnp.allclose(y, y_ref, atol=1e-5, rtol=1e-5)

    print("KERNEL_OK")
</pallas_src>

<mosaic_0001>
module attributes {stable_mosaic.version = 11 : i64} {
  func.func @_proj_kernel_fullk(%arg0: i32, %arg1: i32, %arg2: memref<16x32xf32, #tpu.memory_space<vmem>>, %arg3: memref<512x32xf32, #tpu.memory_space<vmem>>, %arg4: memref<1x512xf32, #tpu.memory_space<vmem>>, %arg5: memref<16x512xf32, #tpu.memory_space<vmem>>) attributes {dimension_semantics = [#tpu.dimension_semantics<parallel>, #tpu.dimension_semantics<parallel>], iteration_bounds = array<i64: 1, 1>, scalar_prefetch = 0 : i64, scratch_operands = 0 : i64, tpu.core_type = #tpu.core_type<tc>, window_params = [{transform_indices = @transform_0, window_bounds = array<i64: 16, 32>}, {transform_indices = @transform_1, window_bounds = array<i64: 512, 32>}, {transform_indices = @transform_2, window_bounds = array<i64: 1, 512>}, {transform_indices = @transform_3, window_bounds = array<i64: 16, 512>}]} {
    %c0 = arith.constant 0 : index
    %c0_0 = arith.constant 0 : index
    %0 = vector.load %arg2[%c0, %c0_0] : memref<16x32xf32, #tpu.memory_space<vmem>>, vector<16x32xf32>
    %c0_1 = arith.constant 0 : index
    %c0_2 = arith.constant 0 : index
    %1 = vector.load %arg3[%c0_1, %c0_2] : memref<512x32xf32, #tpu.memory_space<vmem>>, vector<512x32xf32>
    %cst = arith.constant dense<0.000000e+00> : vector<16x512xf32>
    %2 = tpu.matmul %0, %1, %cst {dimension_numbers = #tpu.dot_dimension_numbers<[1], [1], [0], [0], [0, 0, 1, 0], [], []>} : vector<16x32xf32>, vector<512x32xf32>, vector<16x512xf32> -> vector<16x512xf32>
    %c0_3 = arith.constant 0 : index
    %c0_4 = arith.constant 0 : index
    %3 = vector.load %arg4[%c0_3, %c0_4] : memref<1x512xf32, #tpu.memory_space<vmem>>, vector<1x512xf32>
    %4 = vector.broadcast %3 : vector<1x512xf32> to vector<16x512xf32>
    %5 = arith.addf %2, %4 : vector<16x512xf32>
    %c0_5 = arith.constant 0 : index
    %c0_6 = arith.constant 0 : index
    %6 = vector.load %arg5[%c0_5, %c0_6] : memref<16x512xf32, #tpu.memory_space<vmem>>, vector<16x512xf32>
    tpu.vector_store %arg5[%c0_5, %c0_6], %5 {strides = array<i32>} : memref<16x512xf32, #tpu.memory_space<vmem>>, vector<16x512xf32>,
    return
  }
  func.func @transform_0(%arg0: i32, %arg1: i32) -> (i32, i32) {
    %c0_i32 = arith.constant 0 : i32
    %c0_i32_0 = arith.constant 0 : i32
    return %arg1, %c0_i32 : i32, i32
  }
  func.func @transform_1(%arg0: i32, %arg1: i32) -> (i32, i32) {
    %c0_i32 = arith.constant 0 : i32
    %c0_i32_0 = arith.constant 0 : i32
    return %arg0, %c0_i32 : i32, i32
  }
  func.func @transform_2(%arg0: i32, %arg1: i32) -> (i32, i32) {
    %c0_i32 = arith.constant 0 : i32
    %c0_i32_0 = arith.constant 0 : i32
    return %c0_i32, %arg0 : i32, i32
  }
  func.func @transform_3(%arg0: i32, %arg1: i32) -> (i32, i32) {
    %c0_i32 = arith.constant 0 : i32
    return %arg1, %arg0 : i32, i32
  }
}

</mosaic_0001>

<llo_original>
// kernel: tpu_custom_call.1
$region0: #{tpu_custom_call.1}
  #allocation0 [shape = 'u32[]', space=smem, size = 0x4, offset = 0x4, fixed_abs, tag = 'smem constant byte address 0x4 - core index']
  #allocation1 [shape = 'u32[144,128]{1,0:T(1,128)}', space=vmem, size = 0x12000, scoped, tag = 'internal scratch']
  %s0 = inlined_call_operand.vmem [shape: f32[16,32], index: 0, kind: input, shape index: {}]
  %s1 = inlined_call_operand.vmem [shape: f32[512,32], index: 1, kind: input, shape index: {}]
  %s2 = inlined_call_operand.vmem [shape: f32[1,512], index: 2, kind: input, shape index: {}]
  %s3 = inlined_call_operand.hbm [shape: f32[16,512], index: 3, kind: output, shape index: {}]
  %s4 = sld [smem:[#allocation0]]
  $region22: #{tpu_custom_call.1} parent=0
    _
  %s6 = ssub.s32 1, %s4
  %s7 = scalar_select 0, %s6, %s4
  $region1: #{tpu_custom_call.1} parent=0
    #allocation2 [shape = 'u8[32768]{0}', space=vmem, size = 0x8000, scoped, tag = 'output window, operand 0, single buffered']
    #allocation3 [shape = 's32[1]{0}', space=sflag, size = 0x4, scoped, tag = 'scoped memory for tpu_custom_call.1']
    %8 = vsyncpa [#allocation3], 0
    // Predicated region
    $region2: #{tpu_custom_call.1} parent=1 // pred_check
      _
    $region3: #{tpu_custom_call.1} parent=1 // pred_check_branch
      %10 = sbr.rel (0) target = $region5
    $region4: #{tpu_custom_call.1} parent=1 // pred_region
      _
    $region5: #{tpu_custom_call.1} parent=1 // pred_fallthru
      _
    // Predicated region
    $region6: #{tpu_custom_call.1} parent=1 // pred_check
      _
    $region7: #{tpu_custom_call.1} parent=1 // pred_check_branch
      %12 = sbr.rel (0) target = $region9
    $region8: #{tpu_custom_call.1} parent=1 // pred_region
      _
    $region9: #{tpu_custom_call.1} parent=1 // pred_fallthru
      _
    // Predicated region
    $region10: #{tpu_custom_call.1} parent=1 // pred_check
      _
    $region11: #{tpu_custom_call.1} parent=1 // pred_check_branch
      %14 = sbr.rel (0) target = $region13
    $region12: #{tpu_custom_call.1} parent=1 // pred_region
      _
    $region13: #{tpu_custom_call.1} parent=1 // pred_fallthru
      _
    %v15 = vld [vmem:[%s0] sm:$0xff]
    %v16 = vld [vmem:[%s0 + $0x8] sm:$0xff]
    %v17 = vld [vmem:[%s1] sm:$0xff]
    %v18 = vld [vmem:[%s1 + $0x8] sm:$0xff]
    %v19 = vld [vmem:[%s1 + $0x10] sm:$0xff]
    %v20 = vld [vmem:[%s1 + $0x18] sm:$0xff]
    %v21 = vld [vmem:[%s1 + $0x20] sm:$0xff]
    %v22 = vld [vmem:[%s1 + $0x28] sm:$0xff]
    %v23 = vld [vmem:[%s1 + $0x30] sm:$0xff]
    %v24 = vld [vmem:[%s1 + $0x38] sm:$0xff]
    %v25 = vld [vmem:[%s1 + $0x40] sm:$0xff]
    %v26 = vld [vmem:[%s1 + $0x48] sm:$0xff]
    %v27 = vld [vmem:[%s1 + $0x50] sm:$0xff]
    %v28 = vld [vmem:[%s1 + $0x58] sm:$0xff]
    %v29 = vld [vmem:[%s1 + $0x60] sm:$0xff]
    %v30 = vld [vmem:[%s1 + $0x68] sm:$0xff]
    %v31 = vld [vmem:[%s1 + $0x70] sm:$0xff]
    %v32 = vld [vmem:[%s1 + $0x78] sm:$0xff]
    %v33 = vld [vmem:[%s1 + $0x80] sm:$0xff]
    %v34 = vld [vmem:[%s1 + $0x88] sm:$0xff]
    %v35 = vld [vmem:[%s1 + $0x90] sm:$0xff]
    %v36 = vld [vmem:[%s1 + $0x98] sm:$0xff]
    %v37 = vld [vmem:[%s1 + $0xa0] sm:$0xff]
    %v38 = vld [vmem:[%s1 + $0xa8] sm:$0xff]
    %v39 = vld [vmem:[%s1 + $0xb0] sm:$0xff]
    %v40 = vld [vmem:[%s1 + $0xb8] sm:$0xff]
    %v41 = vld [vmem:[%s1 + $0xc0] sm:$0xff]
    %v42 = vld [vmem:[%s1 + $0xc8] sm:$0xff]
    %v43 = vld [vmem:[%s1 + $0xd0] sm:$0xff]
    %v44 = vld [vmem:[%s1 + $0xd8] sm:$0xff]
    %v45 = vld [vmem:[%s1 + $0xe0] sm:$0xff]
    %v46 = vld [vmem:[%s1 + $0xe8] sm:$0xff]
    %v47 = vld [vmem:[%s1 + $0xf0] sm:$0xff]
    %v48 = vld [vmem:[%s1 + $0xf8] sm:$0xff]
    %v49 = vld [vmem:[%s1 + $0x100] sm:$0xff]
    %v50 = vld [vmem:[%s1 + $0x108] sm:$0xff]
    %v51 = vld [vmem:[%s1 + $0x110] sm:$0xff]
    %v52 = vld [vmem:[%s1 + $0x118] sm:$0xff]
    %v53 = vld [vmem:[%s1 + $0x120] sm:$0xff]
    %v54 = vld [vmem:[%s1 + $0x128] sm:$0xff]
    %v55 = vld [vmem:[%s1 + $0x130] sm:$0xff]
    %v56 = vld [vmem:[%s1 + $0x138] sm:$0xff]
    %v57 = vld [vmem:[%s1 + $0x140] sm:$0xff]
    %v58 = vld [vmem:[%s1 + $0x148] sm:$0xff]
    %v59 = vld [vmem:[%s1 + $0x150] sm:$0xff]
    %v60 = vld [vmem:[%s1 + $0x158] sm:$0xff]
    %v61 = vld [vmem:[%s1 + $0x160] sm:$0xff]
    %v62 = vld [vmem:[%s1 + $0x168] sm:$0xff]
    %v63 = vld [vmem:[%s1 + $0x170] sm:$0xff]
    %v64 = vld [vmem:[%s1 + $0x178] sm:$0xff]
    %v65 = vld [vmem:[%s1 + $0x180] sm:$0xff]
    %v66 = vld [vmem:[%s1 + $0x188] sm:$0xff]
    %v67 = vld [vmem:[%s1 + $0x190] sm:$0xff]
    %v68 = vld [vmem:[%s1 + $0x198] sm:$0xff]
    %v69 = vld [vmem:[%s1 + $0x1a0] sm:$0xff]
    %v70 = vld [vmem:[%s1 + $0x1a8] sm:$0xff]
    %v71 = vld [vmem:[%s1 + $0x1b0] sm:$0xff]
    %v72 = vld [vmem:[%s1 + $0x1b8] sm:$0xff]
    %v73 = vld [vmem:[%s1 + $0x1c0] sm:$0xff]
    %v74 = vld [vmem:[%s1 + $0x1c8] sm:$0xff]
    %v75 = vld [vmem:[%s1 + $0x1d0] sm:$0xff]
    %v76 = vld [vmem:[%s1 + $0x1d8] sm:$0xff]
    %v77 = vld [vmem:[%s1 + $0x1e0] sm:$0xff]
    %v78 = vld [vmem:[%s1 + $0x1e8] sm:$0xff]
    %v79 = vld [vmem:[%s1 + $0x1f0] sm:$0xff]
    %v80 = vld [vmem:[%s1 + $0x1f8] sm:$0xff]
    %v81 = vld [vmem:[%s2] sm:$0xf]
    %v83 = vlaneseq
    %v84 = vshrl.u32 %v83, 7
    %v85 = vsub.s32 0, %v84
    %v86 = vrot.slane %v81, %v85
    %v87 = vlaneseq
    %v88 = vshrl.u32 %v87, 7
    %v89 = vsub.s32 1, %v88
    %v90 = vrot.slane %v81, %v89
    %v91 = vlaneseq
    %v92 = vshrl.u32 %v91, 7
    %v93 = vsub.s32 2, %v92
    %v94 = vrot.slane %v81, %v93
    %v95 = vlaneseq
    %v96 = vshrl.u32 %v95, 7
    %v97 = vsub.s32 3, %v96
    %v98 = vrot.slane %v81, %v97
    %vm103 = vcmask 261120
    %v105 = vsel %vm103, %v15, 0
    %v108 = vsel %vm103, %v16, 0
    %v111 = vsel %vm103, %v17, 0
    %v114 = vsel %vm103, %v18, 0
    %v117 = vsel %vm103, %v19, 0
    %v120 = vsel %vm103, %v20, 0
    %v123 = vsel %vm103, %v21, 0
    %v126 = vsel %vm103, %v22, 0
    %v129 = vsel %vm103, %v23, 0
    %v132 = vsel %vm103, %v24, 0
    %v135 = vsel %vm103, %v25, 0
    %v138 = vsel %vm103, %v26, 0
    %v141 = vsel %vm103, %v27, 0
    %v144 = vsel %vm103, %v28, 0
    %v147 = vsel %vm103, %v29, 0
    %v150 = vsel %vm103, %v30, 0
    %v153 = vsel %vm103, %v31, 0
    %v156 = vsel %vm103, %v32, 0
    %v159 = vsel %vm103, %v33, 0
    %v162 = vsel %vm103, %v34, 0
    %v165 = vsel %vm103, %v35, 0
    %v168 = vsel %vm103, %v36, 0
    %v171 = vsel %vm103, %v37, 0
    %v174 = vsel %vm103, %v38, 0
    %v177 = vsel %vm103, %v39, 0
    %v180 = vsel %vm103, %v40, 0
    %v183 = vsel %vm103, %v41, 0
    %v186 = vsel %vm103, %v42, 0
    %v189 = vsel %vm103, %v43, 0
    %v192 = vsel %vm103, %v44, 0
    %v195 = vsel %vm103, %v45, 0
    %v198 = vsel %vm103, %v46, 0
    %v201 = vsel %vm103, %v47, 0
    %v204 = vsel %vm103, %v48, 0
    %v207 = vsel %vm103, %v49, 0
    %v210 = vsel %vm103, %v50, 0
    %v213 = vsel %vm103, %v51, 0
    %v216 = vsel %vm103, %v52, 0
    %v219 = vsel %vm103, %v53, 0
    %v222 = vsel %vm103, %v54, 0
    %v225 = vsel %vm103, %v55, 0
    %v228 = vsel %vm103, %v56, 0
    %v231 = vsel %vm103, %v57, 0
    %v234 = vsel %vm103, %v58, 0
    %v237 = vsel %vm103, %v59, 0
    %v240 = vsel %vm103, %v60, 0
    %v243 = vsel %vm103, %v61, 0
    %v246 = vsel %vm103, %v62, 0
    %v249 = vsel %vm103, %v63, 0
    %v252 = vsel %vm103, %v64, 0
    %v255 = vsel %vm103, %v65, 0
    %v258 = vsel %vm103, %v66, 0
    %v261 = vsel %vm103, %v67, 0
    %v264 = vsel %vm103, %v68, 0
    %v267 = vsel %vm103, %v69, 0
    %v270 = vsel %vm103, %v70, 0
    %v273 = vsel %vm103, %v71, 0
    %v276 = vsel %vm103, %v72, 0
    %v279 = vsel %vm103, %v73, 0
    %v282 = vsel %vm103, %v74, 0
    %v285 = vsel %vm103, %v75, 0
    %v288 = vsel %vm103, %v76, 0
    %v291 = vsel %vm103, %v77, 0
    %v294 = vsel %vm103, %v78, 0
    %v297 = vsel %vm103, %v79, 0
    %v300 = vsel %vm103, %v80, 0
    %302 = vmatprep.subr.mxu0 0.0
    %303 = vmatpush1.xpose.msra.mxu0 %v111
    %304 = vmatprep.subr.mxu0 0.0
    %305 = vmatpush1.xpose.msra.mxu0 %v114
    %306 = vmatprep.subr.mxu0 0.0
    %307 = vmatpush1.xpose.msra.mxu0 %v117
    %308 = vmatprep.subr.mxu0 0.0
    %309 = vmatpush1.xpose.msra.mxu0 %v120
    %310 = vmatprep.subr.mxu0 0.0
    %311 = vmatpush1.xpose.msra.mxu0 %v123
    %312 = vmatprep.subr.mxu0 0.0
    %313 = vmatpush1.xpose.msra.mxu0 %v126
    %314 = vmatprep.subr.mxu0 0.0
    %315 = vmatpush1.xpose.msra.mxu0 %v129
    %316 = vmatprep.subr.mxu0 0.0
    %317 = vmatpush1.xpose.msra.mxu0 %v132
    %318 = vmatprep.subr.mxu0 0.0
    %319 = vmatpush1.xpose.msra.mxu0 %v135
    %320 = vmatprep.subr.mxu0 0.0
    %321 = vmatpush1.xpose.msra.mxu0 %v138
    %322 = vmatprep.subr.mxu0 0.0
    %323 = vmatpush1.xpose.msra.mxu0 %v141
    %324 = vmatprep.subr.mxu0 0.0
    %325 = vmatpush1.xpose.msra.mxu0 %v144
    %326 = vmatprep.subr.mxu0 0.0
    %327 = vmatpush1.xpose.msra.mxu0 %v147
    %328 = vmatprep.subr.mxu0 0.0
    %329 = vmatpush1.xpose.msra.mxu0 %v150
    %330 = vmatprep.subr.mxu0 0.0
    %331 = vmatpush1.xpose.msra.mxu0 %v153
    %332 = vmatprep.subr.mxu0 0.0
    %333 = vmatpush1.xpose.msra.mxu0 %v156
    %334 = vmatprep.subr.mxu0 0.0
    %335 = vmatpush1.xpose.msra.mxu0 %v159
    %336 = vmatprep.subr.mxu0 0.0
    %337 = vmatpush1.xpose.msra.mxu0 %v162
    %338 = vmatprep.subr.mxu0 0.0
    %339 = vmatpush1.xpose.msra.mxu0 %v165
    %340 = vmatprep.subr.mxu0 0.0
    %341 = vmatpush1.xpose.msra.mxu0 %v168
    %342 = vmatprep.subr.mxu0 0.0
    %343 = vmatpush1.xpose.msra.mxu0 %v171
    %344 = vmatprep.subr.mxu0 0.0
    %345 = vmatpush1.xpose.msra.mxu0 %v174
    %346 = vmatprep.subr.mxu0 0.0
    %347 = vmatpush1.xpose.msra.mxu0 %v177
    %348 = vmatprep.subr.mxu0 0.0
    %349 = vmatpush1.xpose.msra.mxu0 %v180
    %350 = vmatprep.subr.mxu0 0.0
    %351 = vmatpush1.xpose.msra.mxu0 %v183
    %352 = vmatprep.subr.mxu0 0.0
    %353 = vmatpush1.xpose.msra.mxu0 %v186
    %354 = vmatprep.subr.mxu0 0.0
    %355 = vmatpush1.xpose.msra.mxu0 %v189
    %356 = vmatprep.subr.mxu0 0.0
    %357 = vmatpush1.xpose.msra.mxu0 %v192
    %358 = vmatprep.subr.mxu0 0.0
    %359 = vmatpush1.xpose.msra.mxu0 %v195
    %360 = vmatprep.subr.mxu0 0.0
    %361 = vmatpush1.xpose.msra.mxu0 %v198
    %362 = vmatprep.subr.mxu0 0.0
    %363 = vmatpush1.xpose.msra.mxu0 %v201
    %364 = vmatprep.subr.mxu0 0.0
    %365 = vmatpush1.xpose.msra.mxu0 %v204
    %366 = vmatprep.mubr.f32.mxu0 0.0
    %367 = vmatmul.mubr.f32.gmra.mrb[0].mxu0 %v105
    %v368 = vpop.f32.mrb[0].mxu0
    %v369 = vadd.f32 %v86, %v368
    %v370 = vpop.f32.mrb[0].mxu0
    %v371 = vadd.f32 %v90, %v370
    %372 = vmatprep.mubr.f32.mxu0 0.0
    %373 = vmatmul.mubr.f32.gmra.mrb[0].mxu0 %v108
    %v374 = vpop.f32.mrb[0].mxu0
    %v375 = vadd.f32 %v86, %v374
    %v376 = vpop.f32.mrb[0].mxu0
    %v377 = vadd.f32 %v90, %v376
    %378 = vdwg.mxu0
    %379 = vmatprep.subr.mxu0 0.0
    %380 = vmatpush1.xpose.msra.mxu0 %v207
    %381 = vmatprep.subr.mxu0 0.0
    %382 = vmatpush1.xpose.msra.mxu0 %v210
    %383 = vmatprep.subr.mxu0 0.0
    %384 = vmatpush1.xpose.msra.mxu0 %v213
    %385 = vmatprep.subr.mxu0 0.0
    %386 = vmatpush1.xpose.msra.mxu0 %v216
    %387 = vmatprep.subr.mxu0 0.0
    %388 = vmatpush1.xpose.msra.mxu0 %v219
    %389 = vmatprep.subr.mxu0 0.0
    %390 = vmatpush1.xpose.msra.mxu0 %v222
    %391 = vmatprep.subr.mxu0 0.0
    %392 = vmatpush1.xpose.msra.mxu0 %v225
    %393 = vmatprep.subr.mxu0 0.0
    %394 = vmatpush1.xpose.msra.mxu0 %v228
    %395 = vmatprep.subr.mxu0 0.0
    %396 = vmatpush1.xpose.msra.mxu0 %v231
    %397 = vmatprep.subr.mxu0 0.0
    %398 = vmatpush1.xpose.msra.mxu0 %v234
    %399 = vmatprep.subr.mxu0 0.0
    %400 = vmatpush1.xpose.msra.mxu0 %v237
    %401 = vmatprep.subr.mxu0 0.0
    %402 = vmatpush1.xpose.msra.mxu0 %v240
    %403 = vmatprep.subr.mxu0 0.0
    %404 = vmatpush1.xpose.msra.mxu0 %v243
    %405 = vmatprep.subr.mxu0 0.0
    %406 = vmatpush1.xpose.msra.mxu0 %v246
    %407 = vmatprep.subr.mxu0 0.0
    %408 = vmatpush1.xpose.msra.mxu0 %v249
    %409 = vmatprep.subr.mxu0 0.0
    %410 = vmatpush1.xpose.msra.mxu0 %v252
    %411 = vmatprep.subr.mxu0 0.0
    %412 = vmatpush1.xpose.msra.mxu0 %v255
    %413 = vmatprep.subr.mxu0 0.0
    %414 = vmatpush1.xpose.msra.mxu0 %v258
    %415 = vmatprep.subr.mxu0 0.0
    %416 = vmatpush1.xpose.msra.mxu0 %v261
    %417 = vmatprep.subr.mxu0 0.0
    %418 = vmatpush1.xpose.msra.mxu0 %v264
    %419 = vmatprep.subr.mxu0 0.0
    %420 = vmatpush1.xpose.msra.mxu0 %v267
    %421 = vmatprep.subr.mxu0 0.0
    %422 = vmatpush1.xpose.msra.mxu0 %v270
    %423 = vmatprep.subr.mxu0 0.0
    %424 = vmatpush1.xpose.msra.mxu0 %v273
    %425 = vmatprep.subr.mxu0 0.0
    %426 = vmatpush1.xpose.msra.mxu0 %v276
    %427 = vmatprep.subr.mxu0 0.0
    %428 = vmatpush1.xpose.msra.mxu0 %v279
    %429 = vmatprep.subr.mxu0 0.0
    %430 = vmatpush1.xpose.msra.mxu0 %v282
    %431 = vmatprep.subr.mxu0 0.0
    %432 = vmatpush1.xpose.msra.mxu0 %v285
    %433 = vmatprep.subr.mxu0 0.0
    %434 = vmatpush1.xpose.msra.mxu0 %v288
    %435 = vmatprep.subr.mxu0 0.0
    %436 = vmatpush1.xpose.msra.mxu0 %v291
    %437 = vmatprep.subr.mxu0 0.0
    %438 = vmatpush1.xpose.msra.mxu0 %v294
    %439 = vmatprep.subr.mxu0 0.0
    %440 = vmatpush1.xpose.msra.mxu0 %v297
    %441 = vmatprep.subr.mxu0 0.0
    %442 = vmatpush1.xpose.msra.mxu0 %v300
    %443 = vmatprep.mubr.f32.mxu0 0.0
    %444 = vmatmul.mubr.f32.gmra.mrb[0].mxu0 %v105
    %v445 = vpop.f32.mrb[0].mxu0
    %v446 = vadd.f32 %v94, %v445
    %v447 = vpop.f32.mrb[0].mxu0
    %v448 = vadd.f32 %v98, %v447
    %449 = vmatprep.mubr.f32.mxu0 0.0
    %450 = vmatmul.mubr.f32.gmra.mrb[0].mxu0 %v108
    %v451 = vpop.f32.mrb[0].mxu0
    %v452 = vadd.f32 %v94, %v451
    %v453 = vpop.f32.mrb[0].mxu0
    %v454 = vadd.f32 %v98, %v453
    %455 = vdwg.mxu0
    %456 = vst [vmem:[#allocation2] sm:$0xff] %v369
    %457 = vst [vmem:[#allocation2 + $0x8] sm:$0xff] %v371
    %458 = vst [vmem:[#allocation2 + $0x10] sm:$0xff] %v446
    %459 = vst [vmem:[#allocation2 + $0x18] sm:$0xff] %v448
    %460 = vst [vmem:[#allocation2 + $0x20] sm:$0xff] %v375
    %461 = vst [vmem:[#allocation2 + $0x28] sm:$0xff] %v377
    %462 = vst [vmem:[#allocation2 + $0x30] sm:$0xff] %v452
    %463 = vst [vmem:[#allocation2 + $0x38] sm:$0xff] %v454
    // Predicated region
    $region14: #{tpu_custom_call.1} parent=1 // pred_check
      _
    $region15: #{tpu_custom_call.1} parent=1 // pred_check_branch
      %465 = sbr.rel (0) target = $region17
    $region16: #{tpu_custom_call.1} parent=1 // pred_region
      %s467 = ssub.s32 1024, 1024
      %468 = vsyncadd [#allocation3], %s467
      %s469 = sshll.u32 [#allocation2], 4
      %s470 = int_to_ptr.vmem [resolvable:$true] %s469
      %475 = dma.vmem_to_hbm [thread:$0]  %s470, 1024, %s3, [#allocation3], 512, 512, 32
    $region17: #{tpu_custom_call.1} parent=1 // pred_fallthru
      _
    // Predicated region
    $region18: #{tpu_custom_call.1} parent=1 // pred_check
      _
    $region19: #{tpu_custom_call.1} parent=1 // pred_check_branch
      %477 = sbr.rel (0) target = $region21
    $region20: #{tpu_custom_call.1} parent=1 // pred_region
      %478 = dma.done [#allocation3], 1024
    $region21: #{tpu_custom_call.1} parent=1 // pred_fallthru
      _
    %479 = vsyncpa [#allocation3], 1

</llo_original>
